<compile_context>
chip_gen: v6e
topology: v6e:2x2x1
jax: 0.10.0
libtpu: 0.0.40
codegen_flags: <defaults>
</compile_context>

<pallas_src>
import math

import jax
import jax.numpy as jnp
from jax.experimental import pallas as pl
from jax.experimental.pallas import tpu as pltpu

_LANES = 128
_SUBLANES = 8


def _round_up(n, m):
    return ((n + m - 1) // m) * m


def _cdiv(a, b):
    return -(-a // b)


# ----------------------------------------------------------------------------
# Hardware query + tile planning (generation-aware)
# ----------------------------------------------------------------------------
def _tpu_hw():
    """Returns (per-core VMEM capacity bytes, TensorCores per chip)."""
    device_kind = ""
    try:
        device_kind = jax.devices()[0].device_kind.lower()
    except Exception:
        pass
    is_v7 = ("v7" in device_kind) or ("7x" in device_kind)
    # Conservative physical caps: 64 MiB/TC on v7x, 128 MiB on v5e/v6e;
    # default to the smaller one if the generation cannot be identified.
    phys_cap = (64 if (is_v7 or not device_kind) else 128) * 2**20
    vmem_cap = None
    try:
        info = pltpu.get_tpu_info()
        vmem_cap = getattr(info, "vmem_capacity_bytes", None)
    except Exception:
        vmem_cap = None
    vmem_cap = min(int(vmem_cap), phys_cap) if vmem_cap else phys_cap
    num_tc = 2 if is_v7 else 1
    return vmem_cap, num_tc


def _plan_tiles(B, Qp, Dp, Hp, n_mid, vmem_limit, num_tc):
    """Pick (tile_b, grid, padded_B): the largest batch tile whose footprint
    fits the VMEM budget; grid=1 preferred on 1-TC chips, even grid on v7x."""
    B8 = _round_up(max(B, 1), _SUBLANES)

    # Conservative per-batch-row live bytes: peak of the FiLM phase
    # (f32 + bf16 copies of the (Qp, Dp) activation) vs the hidden-layer chain,
    # plus the double-buffered x / output tiles.
    act_row = Qp * max(6 * Dp, 2 * Dp + 10 * Hp)
    row_bytes = 2 * Dp * 4 + 2 * Qp * 4 + act_row

    # Resident constants; counted as double-buffered even though we request
    # Buffered(1), to keep the estimate conservative.
    const_bytes = 2 * (
        2 * Qp * Dp * 4                     # FiLM gamma/beta stack (f32)
        + (Dp + n_mid * Hp) * Hp * 2        # w1 + mid weights (bf16)
        + _SUBLANES * Hp * 4                # bias / w5 stack (f32)
    )
    budget = vmem_limit - const_bytes - (4 << 20)   # compiler/DMA headroom
    max_tb = max(_SUBLANES,
                 (budget // max(row_bytes, 1)) // _SUBLANES * _SUBLANES)

    n_tiles = _cdiv(B8, max_tb)
    if num_tc >= 2 and B8 >= 2 * _SUBLANES:
        n_tiles = max(n_tiles, 2)
        n_tiles += n_tiles % 2              # even grid -> both v7x TCs busy
    tile_b = _round_up(_cdiv(B8, n_tiles), _SUBLANES)

    # MXU M-dimension alignment: make tile_b*Qp a multiple of 256 when the
    # extra zero-padded batch rows stay modest and the tile still fits VMEM.
    m_align = 256 // math.gcd(Qp, 256)
    tb_aligned = _round_up(tile_b, m_align)
    if (tb_aligned <= max_tb
            and tb_aligned * n_tiles - B8 <= max(B8 // 4, _SUBLANES)):
        tile_b = tb_aligned

    return tile_b, n_tiles, tile_b * n_tiles


# ----------------------------------------------------------------------------
# Kernel
# ----------------------------------------------------------------------------
def film_decoder_kernel(x_ref, gb_ref, w1_ref, wmid_ref, bias_ref, b_last_ref,
                        o_ref):
    tb, d = x_ref.shape
    nq = gb_ref.shape[1]

    x = x_ref[...]                                  # (TB, Dp) f32
    gamma = gb_ref[0]                               # (Qp, Dp) f32
    beta = gb_ref[1]                                # (Qp, Dp) f32

    # In-kernel FiLM broadcast replaces the HBM repeat_interleave of x:
    # h[b, q, :] = gamma[q] * x[b] + beta[q].  Qp % 8 == 0 and Dp % 128 == 0,
    # so the collapse to MXU rows is a free view; the layer-1 operand is bf16.
    h = x[:, None, :] * gamma[None, :, :] + beta[None, :, :]    # (TB, Qp, Dp)
    h = h.reshape(tb * nq, d).astype(w1_ref.dtype)              # (TB*Qp, Dp) bf16

    def dense_relu(a, w, b):
        y = jnp.dot(a, w, preferred_element_type=jnp.float32)   # MXU, f32 acc
        return jnp.maximum(y + b, 0.0)                          # VPU epilogue

    h = dense_relu(h, w1_ref[...], bias_ref[0:1, :])            # (rows, Hp) f32
    for li in range(wmid_ref.shape[0]):                         # static unroll
        h = dense_relu(h.astype(wmid_ref.dtype), wmid_ref[li],
                       bias_ref[li + 1:li + 2, :])

    # Final Hp -> 1 layer: VPU multiply + lane reduction (keeps the MXU drain
    # free).  bias_ref's last row holds w5^T; b_last is an SMEM scalar.
    n_mid = wmid_ref.shape[0]
    w5 = bias_ref[n_mid + 1:n_mid + 2, :]                       # (1, Hp) f32
    out = jnp.sum((h * w5).reshape(tb, nq, -1), axis=-1)        # (TB, Qp)
    o_ref[...] = (out + b_last_ref[0]).astype(o_ref.dtype)


# ----------------------------------------------------------------------------
# Wrapper
# ----------------------------------------------------------------------------
def film_gamma_beta(params, queries):
    """FiLM conditioning Linear(1 -> in_dim): per-query gamma/beta (f32)."""
    q = queries.astype(jnp.float32).reshape(-1, 1)              # (Q, 1)
    gamma = q * params["film_gw"] + params["film_gb"]           # (Q, in_dim)
    beta = q * params["film_bw"] + params["film_bb"]
    return gamma, beta


def film_decoder_forward(x, params, queries, *, matmul_dtype=jnp.bfloat16):
    """Pallas forward of FilmDecoder: x (B, ...) -> (B, len(queries))."""
    B = x.shape[0]
    x_flat = x.reshape(B, -1).astype(jnp.float32)
    in_dim = x_flat.shape[1]
    Q = int(queries.shape[0])

    n_layers = len([k for k in params if k.startswith("w")])    # 5 for depth 4
    n_mid = n_layers - 2
    assert n_mid >= 1, "FilmDecoder needs at least 3 linear layers"
    H = params["w1"].shape[1]

    Dp = _round_up(in_dim, _LANES)
    Hp = _round_up(H, _LANES)
    Qp = _round_up(Q, _SUBLANES)

    vmem_cap, num_tc = _tpu_hw()
    vmem_limit = int(vmem_cap * 0.85)          # ~54 MiB v7x, ~108 MiB v5e/v6e
    tile_b, grid, Bp = _plan_tiles(B, Qp, Dp, Hp, n_mid, vmem_limit, num_tc)

    # ---- operand packing (grid-invariant work done once, on XLA) ----
    x_p = jnp.pad(x_flat, ((0, Bp - B), (0, Dp - in_dim)))

    gamma, beta = film_gamma_beta(params, queries)               # (Q, in_dim)
    gb = jnp.stack([
        jnp.pad(gamma, ((0, Qp - Q), (0, Dp - in_dim))),
        jnp.pad(beta, ((0, Qp - Q), (0, Dp - in_dim))),
    ])                                                           # (2, Qp, Dp)

    w1 = jnp.pad(params["w1"],
                 ((0, Dp - in_dim), (0, Hp - H))).astype(matmul_dtype)
    w_mid = jnp.stack([
        jnp.pad(params[f"w{i}"], ((0, Hp - H), (0, Hp - H)))
        for i in range(2, n_layers)
    ]).astype(matmul_dtype)                                      # (n_mid, Hp, Hp)

    pad_row = lambda a: jnp.pad(a.reshape(1, -1), ((0, 0), (0, Hp - a.size)))
    bias = jnp.concatenate(
        [pad_row(params[f"b{i}"]) for i in range(1, n_layers)]
        + [pad_row(params[f"w{n_layers}"])], axis=0)             # (L, Hp) f32
    b_last = params[f"b{n_layers}"].reshape(1).astype(jnp.float32)  # SMEM scalar

    rows = lambda i: (i, 0)          # batch-row tiled operands
    c2 = lambda i: (0, 0)            # constant 2-D blocks (DMA'd once)
    c3 = lambda i: (0, 0, 0)         # constant 3-D blocks
    single = pl.Buffered(1)          # resident constants: no double buffer

    out = pl.pallas_call(
        film_decoder_kernel,
        out_shape=jax.ShapeDtypeStruct((Bp, Qp), jnp.float32),
        grid_spec=pltpu.PrefetchScalarGridSpec(
            num_scalar_prefetch=0,
            grid=(grid,),
            in_specs=[
                pl.BlockSpec((tile_b, Dp), rows),                        # x tile
                pl.BlockSpec((2, Qp, Dp), c3, pipeline_mode=single),     # gamma/beta
                pl.BlockSpec((Dp, Hp), c2, pipeline_mode=single),        # w1
                pl.BlockSpec((n_mid, Hp, Hp), c3, pipeline_mode=single), # w2..w4
                pl.BlockSpec((n_layers, Hp), c2, pipeline_mode=single),  # b1..b4, w5
                pl.BlockSpec(memory_space=pltpu.MemorySpace.SMEM),       # b5 scalar
            ],
            out_specs=pl.BlockSpec((tile_b, Qp), rows),
        ),
        compiler_params=pltpu.CompilerParams(
            dimension_semantics=("parallel",),
            vmem_limit_bytes=vmem_limit,
        ),
    )(x_p, gb, w1, w_mid, bias, b_last)

    return out[:B, :Q]                                           # (B, Q)


# ----------------------------------------------------------------------------
# Pure-JAX reference (mirrors the PyTorch forward + the kernel's bf16 casts)
# ----------------------------------------------------------------------------
def film_decoder_reference(x, params, queries, *, matmul_dtype=jnp.bfloat16):
    B = x.shape[0]
    x_flat = x.reshape(B, -1).astype(jnp.float32)
    Q = queries.shape[0]
    n_layers = len([k for k in params if k.startswith("w")])

    gamma, beta = film_gamma_beta(params, queries)               # (Q, in_dim)
    x_rep = jnp.repeat(x_flat, Q, axis=0)                        # repeat_interleave
    h = jnp.tile(gamma, (B, 1)) * x_rep + jnp.tile(beta, (B, 1))

    for li in range(1, n_layers):
        w = params[f"w{li}"].astype(matmul_dtype)
        h = jnp.dot(h.astype(matmul_dtype), w,
                    preferred_element_type=jnp.float32)
        h = jnp.maximum(h + params[f"b{li}"], 0.0)
    # Final H -> 1 layer in f32, mirroring the kernel's lane reduction.
    w_last = params[f"w{n_layers}"].reshape(1, -1)               # (1, H)
    out = jnp.sum(h * w_last, axis=-1) + params[f"b{n_layers}"].reshape(())
    return out.reshape(B, Q)


def init_params(key, in_dim, hidden, n_hidden_layers):
    """Deterministic synthetic parameters. Weights stored as (fan_in, fan_out)."""
    keys = jax.random.split(key, 16)
    p = {}
    s = 0.05
    p["film_gw"] = s * jax.random.normal(keys[0], (1, in_dim), jnp.float32)
    p["film_gb"] = jnp.ones((1, in_dim), jnp.float32)            # gamma bias ~ 1
    p["film_bw"] = s * jax.random.normal(keys[1], (1, in_dim), jnp.float32)
    p["film_bb"] = jnp.zeros((1, in_dim), jnp.float32)

    dims = [in_dim] + [hidden] * n_hidden_layers + [1]           # 5 linear layers
    for li in range(len(dims) - 1):
        fan_in, fan_out = dims[li], dims[li + 1]
        p[f"w{li + 1}"] = s * jax.random.normal(keys[2 + 2 * li],
                                                (fan_in, fan_out), jnp.float32)
        p[f"b{li + 1}"] = s * jax.random.normal(keys[3 + 2 * li],
                                                (1, fan_out), jnp.float32)
    return p


if __name__ == "__main__":
    # Small shapes consistent with FilmDecoder: x (B, C, S) flattened to
    # in_dim = C*S, `out_dim` query frequencies, 4 hidden layers of width 32.
    B, C, S = 2, 4, 8
    in_dim = C * S        # 32
    out_dim = 8
    hidden = 32
    depth = 4

    key = jax.random.PRNGKey(0)
    kx, kp = jax.random.split(key)
    x = jax.random.normal(kx, (B, C, S), jnp.float32)
    params = init_params(kp, in_dim, hidden, depth)
    queries = jnp.linspace(-1.0, 1.0, out_dim, dtype=jnp.float32)

    out = jax.block_until_ready(jax.jit(film_decoder_forward)(x, params, queries))
    ref = film_decoder_reference(x, params, queries)

    assert out.shape == (B, out_dim), out.shape
    assert jnp.allclose(out, ref, atol=1e-3, rtol=1e-3), (
        "mismatch vs JAX reference, max abs err = "
        f"{float(jnp.max(jnp.abs(out - ref)))}")
    print("KERNEL_OK")
</pallas_src>

<mosaic_0001>
module attributes {stable_mosaic.version = 11 : i64} {
  func.func @film_decoder_kernel(%arg0: i32, %arg1: memref<8x128xf32, #tpu.memory_space<vmem>>, %arg2: memref<2x8x128xf32, #tpu.memory_space<vmem>>, %arg3: memref<128x128xbf16, #tpu.memory_space<vmem>>, %arg4: memref<3x128x128xbf16, #tpu.memory_space<vmem>>, %arg5: memref<5x128xf32, #tpu.memory_space<vmem>>, %arg6: memref<1xf32, #tpu.memory_space<smem>>, %arg7: memref<8x8xf32, #tpu.memory_space<vmem>>) attributes {dimension_semantics = [#tpu.dimension_semantics<parallel>], iteration_bounds = array<i64: 1>, scalar_prefetch = 0 : i64, scratch_operands = 0 : i64, tpu.core_type = #tpu.core_type<tc>, window_params = [{transform_indices = @transform_0, window_bounds = array<i64: 8, 128>}, {pipeline_mode = #tpu.pipeline_mode<synchronous>, transform_indices = @transform_1, window_bounds = array<i64: 2, 8, 128>}, {pipeline_mode = #tpu.pipeline_mode<synchronous>, transform_indices = @transform_2, window_bounds = array<i64: 128, 128>}, {pipeline_mode = #tpu.pipeline_mode<synchronous>, transform_indices = @transform_3, window_bounds = array<i64: 3, 128, 128>}, {pipeline_mode = #tpu.pipeline_mode<synchronous>, transform_indices = @transform_4, window_bounds = array<i64: 5, 128>}, {transform_indices = @transform_5, window_bounds = array<i64: 1>}, {transform_indices = @transform_6, window_bounds = array<i64: 8, 8>}]} {
    %c0 = arith.constant 0 : index
    %c0_0 = arith.constant 0 : index
    %0 = vector.load %arg1[%c0, %c0_0] : memref<8x128xf32, #tpu.memory_space<vmem>>, vector<8x128xf32>
    %c0_1 = arith.constant 0 : index
    %c0_2 = arith.constant 0 : index
    %c0_3 = arith.constant 0 : index
    %1 = vector.load %arg2[%c0_1, %c0_2, %c0_3] : memref<2x8x128xf32, #tpu.memory_space<vmem>>, vector<1x8x128xf32>
    %2 = vector.shape_cast %1 : vector<1x8x128xf32> to vector<8x128xf32>
    %c1 = arith.constant 1 : index
    %c0_4 = arith.constant 0 : index
    %c0_5 = arith.constant 0 : index
    %3 = vector.load %arg2[%c1, %c0_4, %c0_5] : memref<2x8x128xf32, #tpu.memory_space<vmem>>, vector<1x8x128xf32>
    %4 = vector.shape_cast %3 : vector<1x8x128xf32> to vector<8x128xf32>
    %5 = vector.shape_cast %0 : vector<8x128xf32> to vector<8x1x128xf32>
    %6 = vector.shape_cast %2 : vector<8x128xf32> to vector<1x8x128xf32>
    %7 = vector.broadcast %5 : vector<8x1x128xf32> to vector<8x8x128xf32>
    %8 = vector.broadcast %6 : vector<1x8x128xf32> to vector<8x8x128xf32>
    %9 = arith.mulf %7, %8 : vector<8x8x128xf32>
    %10 = vector.shape_cast %4 : vector<8x128xf32> to vector<1x8x128xf32>
    %11 = vector.broadcast %10 : vector<1x8x128xf32> to vector<8x8x128xf32>
    %12 = arith.addf %9, %11 : vector<8x8x128xf32>
    %13 = vector.shape_cast %12 : vector<8x8x128xf32> to vector<64x128xf32>
    %14 = arith.truncf %13 : vector<64x128xf32> to vector<64x128xbf16>
    %c0_6 = arith.constant 0 : index
    %c0_7 = arith.constant 0 : index
    %15 = vector.load %arg3[%c0_6, %c0_7] : memref<128x128xbf16, #tpu.memory_space<vmem>>, vector<128x128xbf16>
    %c0_8 = arith.constant 0 : index
    %c0_9 = arith.constant 0 : index
    %16 = vector.load %arg5[%c0_8, %c0_9] : memref<5x128xf32, #tpu.memory_space<vmem>>, vector<1x128xf32>
    %cst = arith.constant dense<0.000000e+00> : vector<64x128xf32>
    %17 = tpu.matmul %14, %15, %cst {dimension_numbers = #tpu.dot_dimension_numbers<[1], [0], [0], [1], [0, 0, 1, 1], [], []>} : vector<64x128xbf16>, vector<128x128xbf16>, vector<64x128xf32> -> vector<64x128xf32>
    %18 = vector.broadcast %16 : vector<1x128xf32> to vector<64x128xf32>
    %19 = arith.addf %17, %18 : vector<64x128xf32>
    %cst_10 = arith.constant 0.000000e+00 : f32
    %20 = vector.broadcast %cst_10 : f32 to vector<64x128xf32>
    %21 = arith.maximumf %19, %20 : vector<64x128xf32>
    %22 = arith.truncf %21 : vector<64x128xf32> to vector<64x128xbf16>
    %c0_11 = arith.constant 0 : index
    %c0_12 = arith.constant 0 : index
    %c0_13 = arith.constant 0 : index
    %23 = vector.load %arg4[%c0_11, %c0_12, %c0_13] : memref<3x128x128xbf16, #tpu.memory_space<vmem>>, vector<1x128x128xbf16>
    %24 = vector.shape_cast %23 : vector<1x128x128xbf16> to vector<128x128xbf16>
    %c1_14 = arith.constant 1 : index
    %c0_15 = arith.constant 0 : index
    %25 = vector.load %arg5[%c1_14, %c0_15] : memref<5x128xf32, #tpu.memory_space<vmem>>, vector<1x128xf32>
    %cst_16 = arith.constant dense<0.000000e+00> : vector<64x128xf32>
    %26 = tpu.matmul %22, %24, %cst_16 {dimension_numbers = #tpu.dot_dimension_numbers<[1], [0], [0], [1], [0, 0, 1, 1], [], []>} : vector<64x128xbf16>, vector<128x128xbf16>, vector<64x128xf32> -> vector<64x128xf32>
    %27 = vector.broadcast %25 : vector<1x128xf32> to vector<64x128xf32>
    %28 = arith.addf %26, %27 : vector<64x128xf32>
    %cst_17 = arith.constant 0.000000e+00 : f32
    %29 = vector.broadcast %cst_17 : f32 to vector<64x128xf32>
    %30 = arith.maximumf %28, %29 : vector<64x128xf32>
    %31 = arith.truncf %30 : vector<64x128xf32> to vector<64x128xbf16>
    %c1_18 = arith.constant 1 : index
    %c0_19 = arith.constant 0 : index
    %c0_20 = arith.constant 0 : index
    %32 = vector.load %arg4[%c1_18, %c0_19, %c0_20] : memref<3x128x128xbf16, #tpu.memory_space<vmem>>, vector<1x128x128xbf16>
    %33 = vector.shape_cast %32 : vector<1x128x128xbf16> to vector<128x128xbf16>
    %c2 = arith.constant 2 : index
    %c0_21 = arith.constant 0 : index
    %34 = vector.load %arg5[%c2, %c0_21] : memref<5x128xf32, #tpu.memory_space<vmem>>, vector<1x128xf32>
    %cst_22 = arith.constant dense<0.000000e+00> : vector<64x128xf32>
    %35 = tpu.matmul %31, %33, %cst_22 {dimension_numbers = #tpu.dot_dimension_numbers<[1], [0], [0], [1], [0, 0, 1, 1], [], []>} : vector<64x128xbf16>, vector<128x128xbf16>, vector<64x128xf32> -> vector<64x128xf32>
    %36 = vector.broadcast %34 : vector<1x128xf32> to vector<64x128xf32>
    %37 = arith.addf %35, %36 : vector<64x128xf32>
    %cst_23 = arith.constant 0.000000e+00 : f32
    %38 = vector.broadcast %cst_23 : f32 to vector<64x128xf32>
    %39 = arith.maximumf %37, %38 : vector<64x128xf32>
    %40 = arith.truncf %39 : vector<64x128xf32> to vector<64x128xbf16>
    %c2_24 = arith.constant 2 : index
    %c0_25 = arith.constant 0 : index
    %c0_26 = arith.constant 0 : index
    %41 = vector.load %arg4[%c2_24, %c0_25, %c0_26] : memref<3x128x128xbf16, #tpu.memory_space<vmem>>, vector<1x128x128xbf16>
    %42 = vector.shape_cast %41 : vector<1x128x128xbf16> to vector<128x128xbf16>
    %c3 = arith.constant 3 : index
    %c0_27 = arith.constant 0 : index
    %43 = vector.load %arg5[%c3, %c0_27] : memref<5x128xf32, #tpu.memory_space<vmem>>, vector<1x128xf32>
    %cst_28 = arith.constant dense<0.000000e+00> : vector<64x128xf32>
    %44 = tpu.matmul %40, %42, %cst_28 {dimension_numbers = #tpu.dot_dimension_numbers<[1], [0], [0], [1], [0, 0, 1, 1], [], []>} : vector<64x128xbf16>, vector<128x128xbf16>, vector<64x128xf32> -> vector<64x128xf32>
    %45 = vector.broadcast %43 : vector<1x128xf32> to vector<64x128xf32>
    %46 = arith.addf %44, %45 : vector<64x128xf32>
    %cst_29 = arith.constant 0.000000e+00 : f32
    %47 = vector.broadcast %cst_29 : f32 to vector<64x128xf32>
    %48 = arith.maximumf %46, %47 : vector<64x128xf32>
    %c4 = arith.constant 4 : index
    %c0_30 = arith.constant 0 : index
    %49 = vector.load %arg5[%c4, %c0_30] : memref<5x128xf32, #tpu.memory_space<vmem>>, vector<1x128xf32>
    %50 = vector.broadcast %49 : vector<1x128xf32> to vector<64x128xf32>
    %51 = arith.mulf %48, %50 : vector<64x128xf32>
    %52 = vector.shape_cast %51 : vector<64x128xf32> to vector<8x8x128xf32>
    %cst_31 = arith.constant dense<0.000000e+00> : vector<8x8xf32>
    %53 = vector.multi_reduction <add>, %52, %cst_31 [2] : vector<8x8x128xf32> to vector<8x8xf32>
    %c0_32 = arith.constant 0 : index
    %54 = memref.load %arg6[%c0_32] : memref<1xf32, #tpu.memory_space<smem>>
    %55 = vector.broadcast %54 : f32 to vector<8x8xf32>
    %56 = arith.addf %53, %55 : vector<8x8xf32>
    %c0_33 = arith.constant 0 : index
    %c0_34 = arith.constant 0 : index
    %57 = vector.load %arg7[%c0_33, %c0_34] : memref<8x8xf32, #tpu.memory_space<vmem>>, vector<8x8xf32>
    tpu.vector_store %arg7[%c0_33, %c0_34], %56 {strides = array<i32>} : memref<8x8xf32, #tpu.memory_space<vmem>>, vector<8x8xf32>,
    return
  }
  func.func @transform_0(%arg0: i32) -> (i32, i32) {
    %c0_i32 = arith.constant 0 : i32
    %c0_i32_0 = arith.constant 0 : i32
    return %arg0, %c0_i32 : i32, i32
  }
  func.func @transform_1(%arg0: i32) -> (i32, i32, i32) {
    %c0_i32 = arith.constant 0 : i32
    %c0_i32_0 = arith.constant 0 : i32
    %c0_i32_1 = arith.constant 0 : i32
    %c0_i32_2 = arith.constant 0 : i32
    return %c0_i32, %c0_i32_0, %c0_i32_1 : i32, i32, i32
  }
  func.func @transform_2(%arg0: i32) -> (i32, i32) {
    %c0_i32 = arith.constant 0 : i32
    %c0_i32_0 = arith.constant 0 : i32
    %c0_i32_1 = arith.constant 0 : i32
    return %c0_i32, %c0_i32_0 : i32, i32
  }
  func.func @transform_3(%arg0: i32) -> (i32, i32, i32) {
    %c0_i32 = arith.constant 0 : i32
    %c0_i32_0 = arith.constant 0 : i32
    %c0_i32_1 = arith.constant 0 : i32
    %c0_i32_2 = arith.constant 0 : i32
    return %c0_i32, %c0_i32_0, %c0_i32_1 : i32, i32, i32
  }
  func.func @transform_4(%arg0: i32) -> (i32, i32) {
    %c0_i32 = arith.constant 0 : i32
    %c0_i32_0 = arith.constant 0 : i32
    %c0_i32_1 = arith.constant 0 : i32
    return %c0_i32, %c0_i32_0 : i32, i32
  }
  func.func @transform_5(%arg0: i32) -> i32 {
    %c0_i32 = arith.constant 0 : i32
    %c0_i32_0 = arith.constant 0 : i32
    return %c0_i32 : i32
  }
  func.func @transform_6(%arg0: i32) -> (i32, i32) {
    %c0_i32 = arith.constant 0 : i32
    %c0_i32_0 = arith.constant 0 : i32
    return %arg0, %c0_i32 : i32, i32
  }
}

</mosaic_0001>

<llo_original>
// kernel: film_decoder_forward.1
$region0: #{film_decoder_forward.1}
  #allocation0 [shape = 'u32[]', space=smem, size = 0x4, offset = 0x4, fixed_abs, tag = 'smem constant byte address 0x4 - core index']
  #allocation1 [shape = 'u32[144,128]{1,0:T(1,128)}', space=vmem, size = 0x12000, scoped, tag = 'internal scratch']
  #allocation2 [shape = 'f32[1]{0:T(128)S(6)}', space=smem, size = 0x200, scoped, tag = 'scoped memory for film_decoder_forward.1']
  %s0 = inlined_call_operand.vmem [shape: f32[8,128], index: 0, kind: input, shape index: {}]
  %s1 = inlined_call_operand.vmem [shape: f32[2,8,128], index: 1, kind: input, shape index: {}]
  %s2 = inlined_call_operand.vmem [shape: bf16[128,128], index: 2, kind: input, shape index: {}]
  %s3 = inlined_call_operand.vmem [shape: bf16[3,128,128], index: 3, kind: input, shape index: {}]
  %s4 = inlined_call_operand.vmem [shape: f32[5,128], index: 4, kind: input, shape index: {}]
  %s5 = inlined_call_operand.<no memory space> [shape: f32[1], index: 5, kind: input, shape index: {}]
  %s6 = inlined_call_operand.vmem [shape: f32[8,8], index: 6, kind: output, shape index: {}]
  %s7 = sld [smem:[#allocation0]]
  $region34: #{film_decoder_forward.1} parent=0
    _
  %s9 = ssub.s32 1, %s7
  %s10 = scalar_select 0, %s9, %s7
  %11 = sst [smem:[#allocation2]] %s5
  // Predicated region
  $region2: #{film_decoder_forward.1} parent=0 // pred_check
    _
  $region3: #{film_decoder_forward.1} parent=0 // pred_check_branch
    %13 = sbr.rel (0) target = $region5
  $region4: #{film_decoder_forward.1} parent=0 // pred_region
    _
  $region5: #{film_decoder_forward.1} parent=0 // pred_fallthru
    _
  // Predicated region
  $region6: #{film_decoder_forward.1} parent=0 // pred_check
    _
  $region7: #{film_decoder_forward.1} parent=0 // pred_check_branch
    %15 = sbr.rel (0) target = $region9
  $region8: #{film_decoder_forward.1} parent=0 // pred_region
    _
  $region9: #{film_decoder_forward.1} parent=0 // pred_fallthru
    _
  // Predicated region
  $region10: #{film_decoder_forward.1} parent=0 // pred_check
    _
  $region11: #{film_decoder_forward.1} parent=0 // pred_check_branch
    %17 = sbr.rel (0) target = $region13
  $region12: #{film_decoder_forward.1} parent=0 // pred_region
    _
  $region13: #{film_decoder_forward.1} parent=0 // pred_fallthru
    _
  // Predicated region
  $region14: #{film_decoder_forward.1} parent=0 // pred_check
    _
  $region15: #{film_decoder_forward.1} parent=0 // pred_check_branch
    %19 = sbr.rel (0) target = $region17
  $region16: #{film_decoder_forward.1} parent=0 // pred_region
    _
  $region17: #{film_decoder_forward.1} parent=0 // pred_fallthru
    _
  // Predicated region
  $region18: #{film_decoder_forward.1} parent=0 // pred_check
    _
  $region19: #{film_decoder_forward.1} parent=0 // pred_check_branch
    %21 = sbr.rel (0) target = $region21
  $region20: #{film_decoder_forward.1} parent=0 // pred_region
    _
  $region21: #{film_decoder_forward.1} parent=0 // pred_fallthru
    _
  // Predicated region
  $region22: #{film_decoder_forward.1} parent=0 // pred_check
    _
  $region23: #{film_decoder_forward.1} parent=0 // pred_check_branch
    %23 = sbr.rel (0) target = $region25
  $region24: #{film_decoder_forward.1} parent=0 // pred_region
    _
  $region25: #{film_decoder_forward.1} parent=0 // pred_fallthru
    _
  %v25 = vld [vmem:[%s0] sm:$0xff]
  %v26 = vld [vmem:[%s1] sm:$0xff]
  %s27 = scalar_lea.vmem %s1, 8
  %v28 = vld [vmem:[%s27] sm:$0xff]
  %v30 = vcombine.high %v25, %v25
  %v32 = vunpack.c.l.s4 1966171168
  %v33 = vunpack.c.0.s8 %v32
  %v34 = vlaneseq
  %v35 = vshrl.u32 %v34, 7
  %v36 = vsub.s32 %v33, %v35
  %v37 = vrot.slane %v25, %v36
  %v39 = vunpack.c.l.s4 1966171168
  %v40 = vunpack.c.0.s8 %v39
  %v41 = vlaneseq
  %v42 = vshrl.u32 %v41, 7
  %v43 = vsub.s32 %v40, %v42
  %v44 = vrot.slane %v30, %v43
  %v45 = vcombine.high %v37, %v37
  %v46 = vcombine.high %v44, %v44
  %v48 = vunpack.c.l.s4 1966171168
  %v49 = vunpack.c.0.s8 %v48
  %v50 = vlaneseq
  %v51 = vshrl.u32 %v50, 7
  %v52 = vsub.s32 %v49, %v51
  %v53 = vrot.slane %v37, %v52
  %v55 = vunpack.c.l.s4 1966171168
  %v56 = vunpack.c.0.s8 %v55
  %v57 = vlaneseq
  %v58 = vshrl.u32 %v57, 7
  %v59 = vsub.s32 %v56, %v58
  %v60 = vrot.slane %v44, %v59
  %v62 = vunpack.c.l.s4 1966171168
  %v63 = vunpack.c.0.s8 %v62
  %v64 = vlaneseq
  %v65 = vshrl.u32 %v64, 7
  %v66 = vsub.s32 %v63, %v65
  %v67 = vrot.slane %v45, %v66
  %v69 = vunpack.c.l.s4 1966171168
  %v70 = vunpack.c.0.s8 %v69
  %v71 = vlaneseq
  %v72 = vshrl.u32 %v71, 7
  %v73 = vsub.s32 %v70, %v72
  %v74 = vrot.slane %v46, %v73
  %v75 = vcombine.high %v53, %v53
  %v76 = vcombine.high %v60, %v60
  %v77 = vcombine.high %v67, %v67
  %v78 = vcombine.high %v74, %v74
  %v79 = vlaneseq
  %v80 = vshrl.u32 %v79, 7
  %v81 = vsub.s32 0, %v80
  %v82 = vrot.slane %v53, %v81
  %v83 = vlaneseq
  %v84 = vshrl.u32 %v83, 7
  %v85 = vsub.s32 0, %v84
  %v86 = vrot.slane %v67, %v85
  %v87 = vlaneseq
  %v88 = vshrl.u32 %v87, 7
  %v89 = vsub.s32 0, %v88
  %v90 = vrot.slane %v75, %v89
  %v91 = vlaneseq
  %v92 = vshrl.u32 %v91, 7
  %v93 = vsub.s32 0, %v92
  %v94 = vrot.slane %v77, %v93
  %v95 = vlaneseq
  %v96 = vshrl.u32 %v95, 7
  %v97 = vsub.s32 0, %v96
  %v98 = vrot.slane %v60, %v97
  %v99 = vlaneseq
  %v100 = vshrl.u32 %v99, 7
  %v101 = vsub.s32 0, %v100
  %v102 = vrot.slane %v74, %v101
  %v103 = vlaneseq
  %v104 = vshrl.u32 %v103, 7
  %v105 = vsub.s32 0, %v104
  %v106 = vrot.slane %v76, %v105
  %v107 = vlaneseq
  %v108 = vshrl.u32 %v107, 7
  %v109 = vsub.s32 0, %v108
  %v110 = vrot.slane %v78, %v109
  %v119 = vmul.f32 %v82, %v26
  %v120 = vmul.f32 %v86, %v26
  %v121 = vmul.f32 %v90, %v26
  %v122 = vmul.f32 %v94, %v26
  %v123 = vmul.f32 %v98, %v26
  %v124 = vmul.f32 %v102, %v26
  %v125 = vmul.f32 %v106, %v26
  %v126 = vmul.f32 %v110, %v26
  %v127 = vadd.f32 %v119, %v28
  %v128 = vadd.f32 %v120, %v28
  %v129 = vadd.f32 %v121, %v28
  %v130 = vadd.f32 %v122, %v28
  %v131 = vadd.f32 %v123, %v28
  %v132 = vadd.f32 %v124, %v28
  %v133 = vadd.f32 %v125, %v28
  %v134 = vadd.f32 %v126, %v28
  %v135 = vpack.c.bf16 %v128, %v127
  %v136 = vpack.c.bf16 %v130, %v129
  %v137 = vpack.c.bf16 %v132, %v131
  %v138 = vpack.c.bf16 %v134, %v133
  %v139 = vld [vmem:[%s2] sm:$0xf]
  %v140 = vld [vmem:[%s2 + $0x4] sm:$0xf]
  %v141 = vld [vmem:[%s2 + $0x8] sm:$0xf]
  %v142 = vld [vmem:[%s2 + $0xc] sm:$0xf]
  %v143 = vld [vmem:[%s2 + $0x10] sm:$0xf]
  %v144 = vld [vmem:[%s2 + $0x14] sm:$0xf]
  %v145 = vld [vmem:[%s2 + $0x18] sm:$0xf]
  %v146 = vld [vmem:[%s2 + $0x1c] sm:$0xf]
  %v147 = vld [vmem:[%s2 + $0x20] sm:$0xf]
  %v148 = vld [vmem:[%s2 + $0x24] sm:$0xf]
  %v149 = vld [vmem:[%s2 + $0x28] sm:$0xf]
  %v150 = vld [vmem:[%s2 + $0x2c] sm:$0xf]
  %v151 = vld [vmem:[%s2 + $0x30] sm:$0xf]
  %v152 = vld [vmem:[%s2 + $0x34] sm:$0xf]
  %v153 = vld [vmem:[%s2 + $0x38] sm:$0xf]
  %v154 = vld [vmem:[%s2 + $0x3c] sm:$0xf]
  %v155 = vld [vmem:[%s4] sm:$0x1]
  %v156 = vlaneseq
  %v157 = vshrl.u32 %v156, 7
  %v158 = vsub.s32 0, %v157
  %v159 = vrot.slane %v155, %v158
  %v176 = vunpack.c.l.b16 %v139
  %v177 = vunpack.c.l.b16 %v140
  %v178 = vunpack.c.l.b16 %v141
  %v179 = vunpack.c.l.b16 %v142
  %v180 = vunpack.c.l.b16 %v143
  %v181 = vunpack.c.l.b16 %v144
  %v182 = vunpack.c.l.b16 %v145
  %v183 = vunpack.c.l.b16 %v146
  %v184 = vunpack.c.l.b16 %v147
  %v185 = vunpack.c.l.b16 %v148
  %v186 = vunpack.c.l.b16 %v149
  %v187 = vunpack.c.l.b16 %v150
  %v188 = vunpack.c.l.b16 %v151
  %v189 = vunpack.c.l.b16 %v152
  %v190 = vunpack.c.l.b16 %v153
  %v191 = vunpack.c.l.b16 %v154
  %v192 = vpack.c.b16 %v177, %v176
  %v193 = vpack.c.b16 %v179, %v178
  %v194 = vpack.c.b16 %v181, %v180
  %v195 = vpack.c.b16 %v183, %v182
  %v196 = vpack.c.b16 %v185, %v184
  %v197 = vpack.c.b16 %v187, %v186
  %v198 = vpack.c.b16 %v189, %v188
  %v199 = vpack.c.b16 %v191, %v190
  %208 = vmatprep.subr.bf16.mxu0 0
  %209 = vmatpush1.bf16.msra.mxu0 %v199
  %210 = vmatprep.subr.bf16.mxu0 0
  %211 = vmatpush1.bf16.msra.mxu0 %v198
  %212 = vmatprep.subr.bf16.mxu0 0
  %213 = vmatpush1.bf16.msra.mxu0 %v197
  %214 = vmatprep.subr.bf16.mxu0 0
  %215 = vmatpush1.bf16.msra.mxu0 %v196
  %216 = vmatprep.subr.bf16.mxu0 0
  %217 = vmatpush1.bf16.msra.mxu0 %v195
  %218 = vmatprep.subr.bf16.mxu0 0
  %219 = vmatpush1.bf16.msra.mxu0 %v194
  %220 = vmatprep.subr.bf16.mxu0 0
  %221 = vmatpush1.bf16.msra.mxu0 %v193
  %222 = vmatprep.subr.bf16.mxu0 0
  %223 = vmatpush1.bf16.msra.mxu0 %v192
  %224 = vmatprep.subr.bf16.mxu0 0
  %225 = vmatpush2.bf16.msra.mxu0 0
  %226 = vmatprep.subr.bf16.mxu0 0
  %227 = vmatpush2.bf16.msra.mxu0 0
  %228 = vmatprep.subr.bf16.mxu0 0
  %229 = vmatpush2.bf16.msra.mxu0 0
  %230 = vmatprep.subr.bf16.mxu0 0
  %231 = vmatpush2.bf16.msra.mxu0 0
  %232 = vmatprep.subr.bf16.mxu0 0
  %233 = vmatpush2.bf16.msra.mxu0 0
  %234 = vmatprep.subr.bf16.mxu0 0
  %235 = vmatpush2.bf16.msra.mxu0 0
  %236 = vmatprep.subr.bf16.mxu0 0
  %237 = vmatpush2.bf16.msra.mxu0 0
  %238 = vmatprep.subr.bf16.mxu0 0
  %239 = vmatpush2.bf16.msra.mxu0 0
  %240 = vmatprep.mubr.bf16.mxu0 0
  %241 = vmatmul.mubr.bf16.gmra.mxu0 %v135
  %v242 = vpop.f32.mrf.mxu0
  %v243 = vadd.f32 %v159, %v242
  %v244 = vpop.f32.mrf.mxu0
  %v245 = vpop.f32.mrf.mxu0
  %v246 = vadd.f32 %v159, %v245
  %v247 = vpop.f32.mrf.mxu0
  %248 = vmatprep.mubr.bf16.mxu0 0
  %249 = vmatmul.mubr.bf16.gmra.mxu0 %v136
  %v250 = vpop.f32.mrf.mxu0
  %v251 = vadd.f32 %v159, %v250
  %v252 = vpop.f32.mrf.mxu0
  %v253 = vpop.f32.mrf.mxu0
  %v254 = vadd.f32 %v159, %v253
  %v255 = vpop.f32.mrf.mxu0
  %256 = vmatprep.mubr.bf16.mxu0 0
  %257 = vmatmul.mubr.bf16.gmra.mxu0 %v137
  %v258 = vpop.f32.mrf.mxu0
  %v259 = vadd.f32 %v159, %v258
  %v260 = vpop.f32.mrf.mxu0
  %v261 = vpop.f32.mrf.mxu0
  %v262 = vadd.f32 %v159, %v261
  %v263 = vpop.f32.mrf.mxu0
  %264 = vmatprep.mubr.bf16.mxu0 0
  %265 = vmatmul.mubr.bf16.gmra.mxu0 %v138
  %v266 = vpop.f32.mrf.mxu0
  %v267 = vadd.f32 %v159, %v266
  %v268 = vpop.f32.mrf.mxu0
  %v269 = vpop.f32.mrf.mxu0
  %v270 = vadd.f32 %v159, %v269
  %v271 = vpop.f32.mrf.mxu0
  %272 = vdwg.mxu0
  %v273 = vmax.f32 %v243, 0.0
  %v274 = vmax.f32 %v246, 0.0
  %v275 = vmax.f32 %v251, 0.0
  %v276 = vmax.f32 %v254, 0.0
  %v277 = vmax.f32 %v259, 0.0
  %v278 = vmax.f32 %v262, 0.0
  %v279 = vmax.f32 %v267, 0.0
  %v280 = vmax.f32 %v270, 0.0
  %v281 = vpack.c.bf16 %v274, %v273
  %v282 = vpack.c.bf16 %v276, %v275
  %v283 = vpack.c.bf16 %v278, %v277
  %v284 = vpack.c.bf16 %v280, %v279
  %v285 = vld [vmem:[%s3] sm:$0xf]
  %v286 = vld [vmem:[%s3 + $0x4] sm:$0xf]
  %v287 = vld [vmem:[%s3 + $0x8] sm:$0xf]
  %v288 = vld [vmem:[%s3 + $0xc] sm:$0xf]
  %v289 = vld [vmem:[%s3 + $0x10] sm:$0xf]
  %v290 = vld [vmem:[%s3 + $0x14] sm:$0xf]
  %v291 = vld [vmem:[%s3 + $0x18] sm:$0xf]
  %v292 = vld [vmem:[%s3 + $0x1c] sm:$0xf]
  %v293 = vld [vmem:[%s3 + $0x20] sm:$0xf]
  %v294 = vld [vmem:[%s3 + $0x24] sm:$0xf]
  %v295 = vld [vmem:[%s3 + $0x28] sm:$0xf]
  %v296 = vld [vmem:[%s3 + $0x2c] sm:$0xf]
  %v297 = vld [vmem:[%s3 + $0x30] sm:$0xf]
  %v298 = vld [vmem:[%s3 + $0x34] sm:$0xf]
  %v299 = vld [vmem:[%s3 + $0x38] sm:$0xf]
  %v300 = vld [vmem:[%s3 + $0x3c] sm:$0xf]
  %v301 = vld [vmem:[%s4 + $0x1] sm:$0x1]
  %v302 = vlaneseq
  %v303 = vshrl.u32 %v302, 7
  %v304 = vsub.s32 0, %v303
  %v305 = vrot.slane %v301, %v304
  %v322 = vunpack.c.l.b16 %v285
  %v323 = vunpack.c.l.b16 %v286
  %v324 = vunpack.c.l.b16 %v287
  %v325 = vunpack.c.l.b16 %v288
  %v326 = vunpack.c.l.b16 %v289
  %v327 = vunpack.c.l.b16 %v290
  %v328 = vunpack.c.l.b16 %v291
  %v329 = vunpack.c.l.b16 %v292
  %v330 = vunpack.c.l.b16 %v293
  %v331 = vunpack.c.l.b16 %v294
  %v332 = vunpack.c.l.b16 %v295
  %v333 = vunpack.c.l.b16 %v296
  %v334 = vunpack.c.l.b16 %v297
  %v335 = vunpack.c.l.b16 %v298
  %v336 = vunpack.c.l.b16 %v299
  %v337 = vunpack.c.l.b16 %v300
  %v338 = vpack.c.b16 %v323, %v322
  %v339 = vpack.c.b16 %v325, %v324
  %v340 = vpack.c.b16 %v327, %v326
  %v341 = vpack.c.b16 %v329, %v328
  %v342 = vpack.c.b16 %v331, %v330
  %v343 = vpack.c.b16 %v333, %v332
  %v344 = vpack.c.b16 %v335, %v334
  %v345 = vpack.c.b16 %v337, %v336
  %354 = vmatprep.subr.bf16.mxu0 0
  %355 = vmatpush1.bf16.msra.mxu0 %v345
  %356 = vmatprep.subr.bf16.mxu0 0
  %357 = vmatpush1.bf16.msra.mxu0 %v344
  %358 = vmatprep.subr.bf16.mxu0 0
  %359 = vmatpush1.bf16.msra.mxu0 %v343
  %360 = vmatprep.subr.bf16.mxu0 0
  %361 = vmatpush1.bf16.msra.mxu0 %v342
  %362 = vmatprep.subr.bf16.mxu0 0
  %363 = vmatpush1.bf16.msra.mxu0 %v341
  %364 = vmatprep.subr.bf16.mxu0 0
  %365 = vmatpush1.bf16.msra.mxu0 %v340
  %366 = vmatprep.subr.bf16.mxu0 0
  %367 = vmatpush1.bf16.msra.mxu0 %v339
  %368 = vmatprep.subr.bf16.mxu0 0
  %369 = vmatpush1.bf16.msra.mxu0 %v338
  %370 = vmatprep.subr.bf16.mxu0 0
  %371 = vmatpush2.bf16.msra.mxu0 0
  %372 = vmatprep.subr.bf16.mxu0 0
  %373 = vmatpush2.bf16.msra.mxu0 0
  %374 = vmatprep.subr.bf16.mxu0 0
  %375 = vmatpush2.bf16.msra.mxu0 0
  %376 = vmatprep.subr.bf16.mxu0 0
  %377 = vmatpush2.bf16.msra.mxu0 0
  %378 = vmatprep.subr.bf16.mxu0 0
  %379 = vmatpush2.bf16.msra.mxu0 0
  %380 = vmatprep.subr.bf16.mxu0 0
  %381 = vmatpush2.bf16.msra.mxu0 0
  %382 = vmatprep.subr.bf16.mxu0 0
  %383 = vmatpush2.bf16.msra.mxu0 0
  %384 = vmatprep.subr.bf16.mxu0 0
  %385 = vmatpush2.bf16.msra.mxu0 0
  %386 = vmatprep.mubr.bf16.mxu0 0
  %387 = vmatmul.mubr.bf16.gmra.mxu0 %v281
  %v388 = vpop.f32.mrf.mxu0
  %v389 = vadd.f32 %v305, %v388
  %v390 = vpop.f32.mrf.mxu0
  %v391 = vpop.f32.mrf.mxu0
  %v392 = vadd.f32 %v305, %v391
  %v393 = vpop.f32.mrf.mxu0
  %394 = vmatprep.mubr.bf16.mxu0 0
  %395 = vmatmul.mubr.bf16.gmra.mxu0 %v282
  %v396 = vpop.f32.mrf.mxu0
  %v397 = vadd.f32 %v305, %v396
  %v398 = vpop.f32.mrf.mxu0
  %v399 = vpop.f32.mrf.mxu0
  %v400 = vadd.f32 %v305, %v399
  %v401 = vpop.f32.mrf.mxu0
  %402 = vmatprep.mubr.bf16.mxu0 0
  %403 = vmatmul.mubr.bf16.gmra.mxu0 %v283
  %v404 = vpop.f32.mrf.mxu0
  %v405 = vadd.f32 %v305, %v404
  %v406 = vpop.f32.mrf.mxu0
  %v407 = vpop.f32.mrf.mxu0
  %v408 = vadd.f32 %v305, %v407
  %v409 = vpop.f32.mrf.mxu0
  %410 = vmatprep.mubr.bf16.mxu0 0
  %411 = vmatmul.mubr.bf16.gmra.mxu0 %v284
  %v412 = vpop.f32.mrf.mxu0
  %v413 = vadd.f32 %v305, %v412
  %v414 = vpop.f32.mrf.mxu0
  %v415 = vpop.f32.mrf.mxu0
  %v416 = vadd.f32 %v305, %v415
  %v417 = vpop.f32.mrf.mxu0
  %418 = vdwg.mxu0
  %v419 = vmax.f32 %v389, 0.0
  %v420 = vmax.f32 %v392, 0.0
  %v421 = vmax.f32 %v397, 0.0
  %v422 = vmax.f32 %v400, 0.0
  %v423 = vmax.f32 %v405, 0.0
  %v424 = vmax.f32 %v408, 0.0
  %v425 = vmax.f32 %v413, 0.0
  %v426 = vmax.f32 %v416, 0.0
  %v427 = vpack.c.bf16 %v420, %v419
  %v428 = vpack.c.bf16 %v422, %v421
  %v429 = vpack.c.bf16 %v424, %v423
  %v430 = vpack.c.bf16 %v426, %v425
  %s431 = scalar_lea.vmem %s3, 64
  %v432 = vld [vmem:[%s431] sm:$0xf]
  %v433 = vld [vmem:[%s431 + $0x4] sm:$0xf]
  %v434 = vld [vmem:[%s431 + $0x8] sm:$0xf]
  %v435 = vld [vmem:[%s431 + $0xc] sm:$0xf]
  %v436 = vld [vmem:[%s431 + $0x10] sm:$0xf]
  %v437 = vld [vmem:[%s431 + $0x14] sm:$0xf]
  %v438 = vld [vmem:[%s431 + $0x18] sm:$0xf]
  %v439 = vld [vmem:[%s431 + $0x1c] sm:$0xf]
  %v440 = vld [vmem:[%s431 + $0x20] sm:$0xf]
  %v441 = vld [vmem:[%s431 + $0x24] sm:$0xf]
  %v442 = vld [vmem:[%s431 + $0x28] sm:$0xf]
  %v443 = vld [vmem:[%s431 + $0x2c] sm:$0xf]
  %v444 = vld [vmem:[%s431 + $0x30] sm:$0xf]
  %v445 = vld [vmem:[%s431 + $0x34] sm:$0xf]
  %v446 = vld [vmem:[%s431 + $0x38] sm:$0xf]
  %v447 = vld [vmem:[%s431 + $0x3c] sm:$0xf]
  %v448 = vld [vmem:[%s4 + $0x2] sm:$0x1]
  %v449 = vlaneseq
  %v450 = vshrl.u32 %v449, 7
  %v451 = vsub.s32 0, %v450
  %v452 = vrot.slane %v448, %v451
  %v469 = vunpack.c.l.b16 %v432
  %v470 = vunpack.c.l.b16 %v433
  %v471 = vunpack.c.l.b16 %v434
  %v472 = vunpack.c.l.b16 %v435
  %v473 = vunpack.c.l.b16 %v436
  %v474 = vunpack.c.l.b16 %v437
  %v475 = vunpack.c.l.b16 %v438
  %v476 = vunpack.c.l.b16 %v439
  %v477 = vunpack.c.l.b16 %v440
  %v478 = vunpack.c.l.b16 %v441
  %v479 = vunpack.c.l.b16 %v442
  %v480 = vunpack.c.l.b16 %v443
  %v481 = vunpack.c.l.b16 %v444
  %v482 = vunpack.c.l.b16 %v445
  %v483 = vunpack.c.l.b16 %v446
  %v484 = vunpack.c.l.b16 %v447
  %v485 = vpack.c.b16 %v470, %v469
  %v486 = vpack.c.b16 %v472, %v471
  %v487 = vpack.c.b16 %v474, %v473
  %v488 = vpack.c.b16 %v476, %v475
  %v489 = vpack.c.b16 %v478, %v477
  %v490 = vpack.c.b16 %v480, %v479
  %v491 = vpack.c.b16 %v482, %v481
  %v492 = vpack.c.b16 %v484, %v483
  %501 = vmatprep.subr.bf16.mxu0 0
  %502 = vmatpush1.bf16.msra.mxu0 %v492
  %503 = vmatprep.subr.bf16.mxu0 0
  %504 = vmatpush1.bf16.msra.mxu0 %v491
  %505 = vmatprep.subr.bf16.mxu0 0
  %506 = vmatpush1.bf16.msra.mxu0 %v490
  %507 = vmatprep.subr.bf16.mxu0 0
  %508 = vmatpush1.bf16.msra.mxu0 %v489
  %509 = vmatprep.subr.bf16.mxu0 0
  %510 = vmatpush1.bf16.msra.mxu0 %v488
  %511 = vmatprep.subr.bf16.mxu0 0
  %512 = vmatpush1.bf16.msra.mxu0 %v487
  %513 = vmatprep.subr.bf16.mxu0 0
  %514 = vmatpush1.bf16.msra.mxu0 %v486
  %515 = vmatprep.subr.bf16.mxu0 0
  %516 = vmatpush1.bf16.msra.mxu0 %v485
  %517 = vmatprep.subr.bf16.mxu0 0
  %518 = vmatpush2.bf16.msra.mxu0 0
  %519 = vmatprep.subr.bf16.mxu0 0
  %520 = vmatpush2.bf16.msra.mxu0 0
  %521 = vmatprep.subr.bf16.mxu0 0
  %522 = vmatpush2.bf16.msra.mxu0 0
  %523 = vmatprep.subr.bf16.mxu0 0
  %524 = vmatpush2.bf16.msra.mxu0 0
  %525 = vmatprep.subr.bf16.mxu0 0
  %526 = vmatpush2.bf16.msra.mxu0 0
  %527 = vmatprep.subr.bf16.mxu0 0
  %528 = vmatpush2.bf16.msra.mxu0 0
  %529 = vmatprep.subr.bf16.mxu0 0
  %530 = vmatpush2.bf16.msra.mxu0 0
  %531 = vmatprep.subr.bf16.mxu0 0
  %532 = vmatpush2.bf16.msra.mxu0 0
  %533 = vmatprep.mubr.bf16.mxu0 0
  %534 = vmatmul.mubr.bf16.gmra.mxu0 %v427
  %v535 = vpop.f32.mrf.mxu0
  %v536 = vadd.f32 %v452, %v535
  %v537 = vpop.f32.mrf.mxu0
  %v538 = vpop.f32.mrf.mxu0
  %v539 = vadd.f32 %v452, %v538
  %v540 = vpop.f32.mrf.mxu0
  %541 = vmatprep.mubr.bf16.mxu0 0
  %542 = vmatmul.mubr.bf16.gmra.mxu0 %v428
  %v543 = vpop.f32.mrf.mxu0
  %v544 = vadd.f32 %v452, %v543
  %v545 = vpop.f32.mrf.mxu0
  %v546 = vpop.f32.mrf.mxu0
  %v547 = vadd.f32 %v452, %v546
  %v548 = vpop.f32.mrf.mxu0
  %549 = vmatprep.mubr.bf16.mxu0 0
  %550 = vmatmul.mubr.bf16.gmra.mxu0 %v429
  %v551 = vpop.f32.mrf.mxu0
  %v552 = vadd.f32 %v452, %v551
  %v553 = vpop.f32.mrf.mxu0
  %v554 = vpop.f32.mrf.mxu0
  %v555 = vadd.f32 %v452, %v554
  %v556 = vpop.f32.mrf.mxu0
  %557 = vmatprep.mubr.bf16.mxu0 0
  %558 = vmatmul.mubr.bf16.gmra.mxu0 %v430
  %v559 = vpop.f32.mrf.mxu0
  %v560 = vadd.f32 %v452, %v559
  %v561 = vpop.f32.mrf.mxu0
  %v562 = vpop.f32.mrf.mxu0
  %v563 = vadd.f32 %v452, %v562
  %v564 = vpop.f32.mrf.mxu0
  %565 = vdwg.mxu0
  %v566 = vmax.f32 %v536, 0.0
  %v567 = vmax.f32 %v539, 0.0
  %v568 = vmax.f32 %v544, 0.0
  %v569 = vmax.f32 %v547, 0.0
  %v570 = vmax.f32 %v552, 0.0
  %v571 = vmax.f32 %v555, 0.0
  %v572 = vmax.f32 %v560, 0.0
  %v573 = vmax.f32 %v563, 0.0
  %v574 = vpack.c.bf16 %v567, %v566
  %v575 = vpack.c.bf16 %v569, %v568
  %v576 = vpack.c.bf16 %v571, %v570
  %v577 = vpack.c.bf16 %v573, %v572
  %s578 = scalar_lea.vmem %s3, 128
  %v579 = vld [vmem:[%s578] sm:$0xf]
  %v580 = vld [vmem:[%s578 + $0x4] sm:$0xf]
  %v581 = vld [vmem:[%s578 + $0x8] sm:$0xf]
  %v582 = vld [vmem:[%s578 + $0xc] sm:$0xf]
  %v583 = vld [vmem:[%s578 + $0x10] sm:$0xf]
  %v584 = vld [vmem:[%s578 + $0x14] sm:$0xf]
  %v585 = vld [vmem:[%s578 + $0x18] sm:$0xf]
  %v586 = vld [vmem:[%s578 + $0x1c] sm:$0xf]
  %v587 = vld [vmem:[%s578 + $0x20] sm:$0xf]
  %v588 = vld [vmem:[%s578 + $0x24] sm:$0xf]
  %v589 = vld [vmem:[%s578 + $0x28] sm:$0xf]
  %v590 = vld [vmem:[%s578 + $0x2c] sm:$0xf]
  %v591 = vld [vmem:[%s578 + $0x30] sm:$0xf]
  %v592 = vld [vmem:[%s578 + $0x34] sm:$0xf]
  %v593 = vld [vmem:[%s578 + $0x38] sm:$0xf]
  %v594 = vld [vmem:[%s578 + $0x3c] sm:$0xf]
  %v595 = vld [vmem:[%s4 + $0x3] sm:$0x1]
  %v596 = vlaneseq
  %v597 = vshrl.u32 %v596, 7
  %v598 = vsub.s32 0, %v597
  %v599 = vrot.slane %v595, %v598
  %v616 = vunpack.c.l.b16 %v579
  %v617 = vunpack.c.l.b16 %v580
  %v618 = vunpack.c.l.b16 %v581
  %v619 = vunpack.c.l.b16 %v582
  %v620 = vunpack.c.l.b16 %v583
  %v621 = vunpack.c.l.b16 %v584
  %v622 = vunpack.c.l.b16 %v585
  %v623 = vunpack.c.l.b16 %v586
  %v624 = vunpack.c.l.b16 %v587
  %v625 = vunpack.c.l.b16 %v588
  %v626 = vunpack.c.l.b16 %v589
  %v627 = vunpack.c.l.b16 %v590
  %v628 = vunpack.c.l.b16 %v591
  %v629 = vunpack.c.l.b16 %v592
  %v630 = vunpack.c.l.b16 %v593
  %v631 = vunpack.c.l.b16 %v594
  %v632 = vpack.c.b16 %v617, %v616
  %v633 = vpack.c.b16 %v619, %v618
  %v634 = vpack.c.b16 %v621, %v620
  %v635 = vpack.c.b16 %v623, %v622
  %v636 = vpack.c.b16 %v625, %v624
  %v637 = vpack.c.b16 %v627, %v626
  %v638 = vpack.c.b16 %v629, %v628
  %v639 = vpack.c.b16 %v631, %v630
  %648 = vmatprep.subr.bf16.mxu0 0
  %649 = vmatpush1.bf16.msra.mxu0 %v639
  %650 = vmatprep.subr.bf16.mxu0 0
  %651 = vmatpush1.bf16.msra.mxu0 %v638
  %652 = vmatprep.subr.bf16.mxu0 0
  %653 = vmatpush1.bf16.msra.mxu0 %v637
  %654 = vmatprep.subr.bf16.mxu0 0
  %655 = vmatpush1.bf16.msra.mxu0 %v636
  %656 = vmatprep.subr.bf16.mxu0 0
  %657 = vmatpush1.bf16.msra.mxu0 %v635
  %658 = vmatprep.subr.bf16.mxu0 0
  %659 = vmatpush1.bf16.msra.mxu0 %v634
  %660 = vmatprep.subr.bf16.mxu0 0
  %661 = vmatpush1.bf16.msra.mxu0 %v633
  %662 = vmatprep.subr.bf16.mxu0 0
  %663 = vmatpush1.bf16.msra.mxu0 %v632
  %664 = vmatprep.subr.bf16.mxu0 0
  %665 = vmatpush2.bf16.msra.mxu0 0
  %666 = vmatprep.subr.bf16.mxu0 0
  %667 = vmatpush2.bf16.msra.mxu0 0
  %668 = vmatprep.subr.bf16.mxu0 0
  %669 = vmatpush2.bf16.msra.mxu0 0
  %670 = vmatprep.subr.bf16.mxu0 0
  %671 = vmatpush2.bf16.msra.mxu0 0
  %672 = vmatprep.subr.bf16.mxu0 0
  %673 = vmatpush2.bf16.msra.mxu0 0
  %674 = vmatprep.subr.bf16.mxu0 0
  %675 = vmatpush2.bf16.msra.mxu0 0
  %676 = vmatprep.subr.bf16.mxu0 0
  %677 = vmatpush2.bf16.msra.mxu0 0
  %678 = vmatprep.subr.bf16.mxu0 0
  %679 = vmatpush2.bf16.msra.mxu0 0
  %680 = vmatprep.mubr.bf16.mxu0 0
  %681 = vmatmul.mubr.bf16.gmra.mxu0 %v574
  %v682 = vpop.f32.mrf.mxu0
  %v683 = vadd.f32 %v599, %v682
  %v684 = vpop.f32.mrf.mxu0
  %v685 = vpop.f32.mrf.mxu0
  %v686 = vadd.f32 %v599, %v685
  %v687 = vpop.f32.mrf.mxu0
  %688 = vmatprep.mubr.bf16.mxu0 0
  %689 = vmatmul.mubr.bf16.gmra.mxu0 %v575
  %v690 = vpop.f32.mrf.mxu0
  %v691 = vadd.f32 %v599, %v690
  %v692 = vpop.f32.mrf.mxu0
  %v693 = vpop.f32.mrf.mxu0
  %v694 = vadd.f32 %v599, %v693
  %v695 = vpop.f32.mrf.mxu0
  %696 = vmatprep.mubr.bf16.mxu0 0
  %697 = vmatmul.mubr.bf16.gmra.mxu0 %v576
  %v698 = vpop.f32.mrf.mxu0
  %v699 = vadd.f32 %v599, %v698
  %v700 = vpop.f32.mrf.mxu0
  %v701 = vpop.f32.mrf.mxu0
  %v702 = vadd.f32 %v599, %v701
  %v703 = vpop.f32.mrf.mxu0
  %704 = vmatprep.mubr.bf16.mxu0 0
  %705 = vmatmul.mubr.bf16.gmra.mxu0 %v577
  %v706 = vpop.f32.mrf.mxu0
  %v707 = vadd.f32 %v599, %v706
  %v708 = vpop.f32.mrf.mxu0
  %v709 = vpop.f32.mrf.mxu0
  %v710 = vadd.f32 %v599, %v709
  %v711 = vpop.f32.mrf.mxu0
  %712 = vdwg.mxu0
  %v713 = vmax.f32 %v683, 0.0
  %v714 = vmax.f32 %v686, 0.0
  %v715 = vmax.f32 %v691, 0.0
  %v716 = vmax.f32 %v694, 0.0
  %v717 = vmax.f32 %v699, 0.0
  %v718 = vmax.f32 %v702, 0.0
  %v719 = vmax.f32 %v707, 0.0
  %v720 = vmax.f32 %v710, 0.0
  %v721 = vld [vmem:[%s4 + $0x4] sm:$0x1]
  %v722 = vlaneseq
  %v723 = vshrl.u32 %v722, 7
  %v724 = vsub.s32 0, %v723
  %v725 = vrot.slane %v721, %v724
  %v726 = vmul.f32 %v713, %v725
  %v727 = vmul.f32 %v714, %v725
  %v728 = vmul.f32 %v715, %v725
  %v729 = vmul.f32 %v716, %v725
  %v730 = vmul.f32 %v717, %v725
  %v731 = vmul.f32 %v718, %v725
  %v732 = vmul.f32 %v719, %v725
  %v733 = vmul.f32 %v720, %v725
  %734 = vadd.xlane.f32.xlu0 %v726
  %v735 = vpop.xlane.xlu0 %734
  %736 = vadd.xlane.f32.xlu0 %v727
  %v737 = vpop.xlane.xlu0 %736
  %738 = vadd.xlane.f32.xlu0 %v728
  %v739 = vpop.xlane.xlu0 %738
  %740 = vadd.xlane.f32.xlu0 %v729
  %v741 = vpop.xlane.xlu0 %740
  %742 = vadd.xlane.f32.xlu0 %v730
  %v743 = vpop.xlane.xlu0 %742
  %744 = vadd.xlane.f32.xlu0 %v731
  %v745 = vpop.xlane.xlu0 %744
  %746 = vadd.xlane.f32.xlu0 %v732
  %v747 = vpop.xlane.xlu0 %746
  %748 = vadd.xlane.f32.xlu0 %v733
  %v749 = vpop.xlane.xlu0 %748
  %s750 = sld [smem:[#allocation2]]
  %v751 = vstv %s750
  %v752 = vadd.f32 %v735, %v751
  %v753 = vadd.f32 %v737, %v751
  %v754 = vadd.f32 %v739, %v751
  %v755 = vadd.f32 %v741, %v751
  %v756 = vadd.f32 %v743, %v751
  %v757 = vadd.f32 %v745, %v751
  %v758 = vadd.f32 %v747, %v751
  %v759 = vadd.f32 %v749, %v751
  %v768 = vlaneseq
  %v769 = vand.u32 %v768, 127
  %v770 = vlaneseq
  %v771 = vshrl.u32 %v770, 7
  %v772 = vsub.s32 %v769, %v771
  %v773 = vrot.slane %v752, %v772
  %v774 = vlaneseq
  %v775 = vshrl.u32 %v774, 7
  %v776 = vsub.s32 %v769, %v775
  %v777 = vrot.slane %v753, %v776
  %v778 = vlaneseq
  %v779 = vshrl.u32 %v778, 7
  %v780 = vsub.s32 %v769, %v779
  %v781 = vrot.slane %v754, %v780
  %v782 = vlaneseq
  %v783 = vshrl.u32 %v782, 7
  %v784 = vsub.s32 %v769, %v783
  %v785 = vrot.slane %v755, %v784
  %v786 = vlaneseq
  %v787 = vshrl.u32 %v786, 7
  %v788 = vsub.s32 %v769, %v787
  %v789 = vrot.slane %v756, %v788
  %v790 = vlaneseq
  %v791 = vshrl.u32 %v790, 7
  %v792 = vsub.s32 %v769, %v791
  %v793 = vrot.slane %v757, %v792
  %v794 = vlaneseq
  %v795 = vshrl.u32 %v794, 7
  %v796 = vsub.s32 %v769, %v795
  %v797 = vrot.slane %v758, %v796
  %v798 = vlaneseq
  %v799 = vshrl.u32 %v798, 7
  %v800 = vsub.s32 %v769, %v799
  %v801 = vrot.slane %v759, %v800
  %vm802 = vcmask 1041409
  %v803 = vsel %vm802, %v777, %v773
  %vm804 = vcmask 1042434
  %v805 = vsel %vm804, %v781, %v803
  %vm806 = vcmask 1043459
  %v807 = vsel %vm806, %v785, %v805
  %vm808 = vcmask 1044484
  %v809 = vsel %vm808, %v789, %v807
  %vm810 = vcmask 1045509
  %v811 = vsel %vm810, %v793, %v809
  %vm812 = vcmask 1046534
  %v813 = vsel %vm812, %v797, %v811
  %vm814 = vcmask 1047559
  %v815 = vsel %vm814, %v801, %v813
  %vm817 = vcmask 64512
  %818 = vst.msk [vmem:[%s6] sm:$0xff] %vm817, %v815
  // Predicated region
  $region26: #{film_decoder_forward.1} parent=0 // pred_check
    _
  $region27: #{film_decoder_forward.1} parent=0 // pred_check_branch
    %820 = sbr.rel (0) target = $region29
  $region28: #{film_decoder_forward.1} parent=0 // pred_region
    _
  $region29: #{film_decoder_forward.1} parent=0 // pred_fallthru
    _
  // Predicated region
  $region30: #{film_decoder_forward.1} parent=0 // pred_check
    _
  $region31: #{film_decoder_forward.1} parent=0 // pred_check_branch
    %822 = sbr.rel (0) target = $region33
  $region32: #{film_decoder_forward.1} parent=0 // pred_region
    _
  $region33: #{film_decoder_forward.1} parent=0 // pred_fallthru
    _

</llo_original>
